<compile_context>
chip_gen: v5e
topology: v5e:2x2
jax: 0.10.0
libtpu: 0.0.40
codegen_flags: <defaults>
</compile_context>

<pallas_src>
import jax
import jax.numpy as jnp
from jax.experimental import pallas as pl
from jax.experimental.pallas import tpu as pltpu

FEAT_DIM = 64     # get_features() output width per branch (fixed by the model)
LANES = 128       # TPU lane width / packed slab width


def _round_up(x, m):
    return (x + m - 1) // m * m


# ---------------------------------------------------------------------------
# Kernel: entire FusionModel forward for one batch tile.
#   x_ref   (bb, C*T)   flattened input (mean-over-T folded into w_ref)
#   w_ref   (C*T, 128)  collapsed weight slab; live columns:
#                         0,1 -> attention logits
#                         2   -> fc(lstm_proj)  (+ b_fc folded in via bias)
#                         3   -> fc(trans_proj) (+ b_fc folded in via bias)
#   b_ref   (1, 128)    collapsed bias row (4 live entries)
#   out_ref (bb, 1)     final output column (stored directly, no padding)
# ---------------------------------------------------------------------------
def _fusion_kernel(x_ref, w_ref, b_ref, out_ref):
    # Single MXU pass + one broadcast bias add.
    head = (jnp.dot(x_ref[...], w_ref[...],
                    preferred_element_type=jnp.float32)
            + b_ref[...])                                        # (bb, 128)

    # Exact 2-way softmax via the sigmoid identity (pure VPU/EUP, no XLU):
    #   attn0 = exp(l0) / (exp(l0) + exp(l1)) = 1 / (1 + exp(l1 - l0))
    a0 = 1.0 / (1.0 + jnp.exp(head[:, 1:2] - head[:, 0:1]))     # (bb, 1)
    a1 = 1.0 - a0

    # fc(fused) = attn0*(lp@W_fc + b_fc) + attn1*(tp@W_fc + b_fc)
    out_ref[...] = a0 * head[:, 2:3] + a1 * head[:, 3:4]


# ---------------------------------------------------------------------------
# Parameter init (unpacked, PyTorch-equivalent layout).
# ---------------------------------------------------------------------------
def init_params(key, in_channels, hidden_size):
    ks = jax.random.split(key, 12)

    def w(k, fi, fo):
        return jax.random.normal(k, (fi, fo), jnp.float32) * 0.05

    def b(k, fo):
        return jax.random.normal(k, (fo,), jnp.float32) * 0.05

    return {
        # stand-in tcn_lstm / tcn_trans feature extractors (C -> 64)
        "w_feat_l": w(ks[0], in_channels, FEAT_DIM), "b_feat_l": b(ks[1], FEAT_DIM),
        "w_feat_t": w(ks[2], in_channels, FEAT_DIM), "b_feat_t": b(ks[3], FEAT_DIM),
        # proj_lstm / proj_trans (64 -> H)
        "w_pl": w(ks[4], FEAT_DIM, hidden_size), "b_pl": b(ks[5], hidden_size),
        "w_pt": w(ks[6], FEAT_DIM, hidden_size), "b_pt": b(ks[7], hidden_size),
        # attention Linear(2H -> 2)
        "w_att": w(ks[8], 2 * hidden_size, 2), "b_att": b(ks[9], 2),
        # fc (H -> 1)
        "w_fc": w(ks[10], hidden_size, 1), "b_fc": b(ks[11], 1),
    }


# ---------------------------------------------------------------------------
# Pack-time collapse of the whole linear graph into one weight + one bias.
# Exact algebra (the stand-in extractors are linear); done once, outside
# the kernel.
# ---------------------------------------------------------------------------
def pack_params(p, hidden_size, seq_len):
    H = hidden_size
    f32 = jnp.float32

    # Effective pooled -> proj weights/biases per branch.
    w_l = p["w_feat_l"] @ p["w_pl"]                         # (C, H)
    b_l = p["b_feat_l"] @ p["w_pl"] + p["b_pl"]             # (H,)
    w_t = p["w_feat_t"] @ p["w_pt"]                         # (C, H)
    b_t = p["b_feat_t"] @ p["w_pt"] + p["b_pt"]             # (H,)
    C = w_l.shape[0]

    # Head columns per branch: [logit0, logit1, fc(lp), fc(tp)].
    w_att_l = p["w_att"][:H, :]                             # (H, 2)
    w_att_t = p["w_att"][H:, :]                             # (H, 2)
    w_fc = p["w_fc"][:, 0:1]                                # (H, 1)
    zH1 = jnp.zeros((H, 1), f32)
    w_head_l = jnp.concatenate([w_att_l, w_fc, zH1], axis=1)   # (H, 4)
    w_head_t = jnp.concatenate([w_att_t, zH1, w_fc], axis=1)   # (H, 4)

    # Collapse: pooled @ w_comb + b_comb gives all four head columns.
    w_comb = w_l @ w_head_l + w_t @ w_head_t                # (C, 4)
    b_comb = b_l @ w_head_l + b_t @ w_head_t                # (4,)
    b_comb = b_comb.at[0:2].add(p["b_att"])                 # attention bias
    b_comb = b_comb.at[2:4].add(p["b_fc"][0])               # fold b_fc (attn sums to 1)

    # Pad to 128 lanes; fold mean-over-T:
    #   pooled @ W == reshape(x, (B, C*T)) @ repeat(W, T, axis=0) / T
    w_all = jnp.zeros((C, LANES), f32).at[:, :4].set(w_comb.astype(f32))
    w_all = jnp.repeat(w_all, seq_len, axis=0) / seq_len    # (C*T, 128)
    b_all = jnp.zeros((1, LANES), f32).at[0, :4].set(b_comb.astype(f32))
    return w_all, b_all


# ---------------------------------------------------------------------------
# Wrapper: single pallas_call for the whole forward pass.
# ---------------------------------------------------------------------------
def fusion_model(x, packed, *, batch_block=512, vmem_budget=32 << 20):
    """x: (B, C, T) channels-first. Returns (B, 1)."""
    B, C, T = x.shape
    w_all, b_all = packed
    CT = C * T
    assert w_all.shape == (CT, LANES), "packed params don't match input shape"

    # Contiguous metadata reshape; the mean over T lives in w_all.
    x2 = x.reshape(B, CT)

    # Derive the batch tile from the VMEM working set (never the bb=B fallback):
    # per-tile VMEM ~ double-buffered x + double-buffered (lane-padded) out
    # + double-buffered grid-invariant weight slab + bias row.
    def working_set(b):
        return 4 * (2 * b * CT + 2 * b * LANES + 2 * CT * LANES + 2 * 8 * LANES)

    bb = min(batch_block, _round_up(B, 8))
    while working_set(bb) > vmem_budget and bb > 8:
        bb = max(8, _round_up(bb // 2, 8))

    Bp = _round_up(B, bb)
    if Bp != B:
        x2 = jnp.pad(x2, ((0, Bp - B), (0, 0)))   # zero rows; sliced off below
    grid = (Bp // bb,)

    vmem_limit = int(min(max(working_set(bb) * 5 // 4 + (1 << 20), 4 << 20),
                         64 << 20))

    out = pl.pallas_call(
        _fusion_kernel,
        out_shape=jax.ShapeDtypeStruct((Bp, 1), jnp.float32),
        grid=grid,
        in_specs=[
            pl.BlockSpec((bb, CT), lambda i: (i, 0)),
            pl.BlockSpec((CT, LANES), lambda i: (0, 0)),
            pl.BlockSpec((1, LANES), lambda i: (0, 0)),
        ],
        out_specs=pl.BlockSpec((bb, 1), lambda i: (i, 0)),
        compiler_params=pltpu.CompilerParams(
            dimension_semantics=("parallel",),
            vmem_limit_bytes=vmem_limit,
        ),
    )(x2, w_all, b_all)

    return out[:B]


# ---------------------------------------------------------------------------
# Pure-JAX reference (unpacked params) for correctness checking.
# ---------------------------------------------------------------------------
def _reference(x, p):
    pooled = jnp.mean(x, axis=2)                              # (B, C)
    lf = pooled @ p["w_feat_l"] + p["b_feat_l"]               # (B, 64)
    tf = pooled @ p["w_feat_t"] + p["b_feat_t"]               # (B, 64)
    lp = lf @ p["w_pl"] + p["b_pl"]                           # (B, H)
    tp = tf @ p["w_pt"] + p["b_pt"]                           # (B, H)
    logits = jnp.concatenate([lp, tp], axis=1) @ p["w_att"] + p["b_att"]
    attn = jax.nn.softmax(logits, axis=1)
    fused = attn[:, 0:1] * lp + attn[:, 1:2] * tp
    return fused @ p["w_fc"] + p["b_fc"]


if __name__ == "__main__":
    key = jax.random.PRNGKey(0)
    k_x, k_p = jax.random.split(key)

    B, C, T = 2, 4, 16
    hidden_size = 32

    x = jax.random.normal(k_x, (B, C, T), jnp.float32)
    params = init_params(k_p, C, hidden_size)
    packed = pack_params(params, hidden_size, T)

    out = jax.block_until_ready(fusion_model(x, packed))
    ref = _reference(x, params)

    assert out.shape == (B, 1), out.shape
    # Exact algebra (no approx reciprocal anymore) -> much tighter tolerance.
    assert jnp.allclose(out, ref, atol=1e-4, rtol=1e-3), (out, ref)

    print("KERNEL_OK")
</pallas_src>

<mosaic_0001>
module attributes {stable_mosaic.version = 11 : i64} {
  func.func @_fusion_kernel(%arg0: i32, %arg1: memref<8x64xf32, #tpu.memory_space<vmem>>, %arg2: memref<64x128xf32, #tpu.memory_space<vmem>>, %arg3: memref<1x128xf32, #tpu.memory_space<vmem>>, %arg4: memref<8x1xf32, #tpu.memory_space<vmem>>) attributes {dimension_semantics = [#tpu.dimension_semantics<parallel>], iteration_bounds = array<i64: 1>, scalar_prefetch = 0 : i64, scratch_operands = 0 : i64, tpu.core_type = #tpu.core_type<tc>, window_params = [{transform_indices = @transform_0, window_bounds = array<i64: 8, 64>}, {pipeline_mode = #tpu.pipeline_mode<synchronous>, transform_indices = @transform_1, window_bounds = array<i64: 64, 128>}, {pipeline_mode = #tpu.pipeline_mode<synchronous>, transform_indices = @transform_2, window_bounds = array<i64: 1, 128>}, {transform_indices = @transform_3, window_bounds = array<i64: 8, 1>}]} {
    %c0 = arith.constant 0 : index
    %c0_0 = arith.constant 0 : index
    %0 = vector.load %arg1[%c0, %c0_0] : memref<8x64xf32, #tpu.memory_space<vmem>>, vector<8x64xf32>
    %c0_1 = arith.constant 0 : index
    %c0_2 = arith.constant 0 : index
    %1 = vector.load %arg2[%c0_1, %c0_2] : memref<64x128xf32, #tpu.memory_space<vmem>>, vector<64x128xf32>
    %cst = arith.constant dense<0.000000e+00> : vector<8x128xf32>
    %2 = tpu.matmul %0, %1, %cst {dimension_numbers = #tpu.dot_dimension_numbers<[1], [0], [0], [1], [0, 0, 1, 1], [], []>} : vector<8x64xf32>, vector<64x128xf32>, vector<8x128xf32> -> vector<8x128xf32>
    %c0_3 = arith.constant 0 : index
    %c0_4 = arith.constant 0 : index
    %3 = vector.load %arg3[%c0_3, %c0_4] : memref<1x128xf32, #tpu.memory_space<vmem>>, vector<1x128xf32>
    %4 = vector.broadcast %3 : vector<1x128xf32> to vector<8x128xf32>
    %5 = arith.addf %2, %4 : vector<8x128xf32>
    %6 = vector.extract_strided_slice %5 {offsets = [0, 1], sizes = [8, 1], strides = [1, 1]} : vector<8x128xf32> to vector<8x1xf32>
    %7 = vector.extract_strided_slice %5 {offsets = [0, 0], sizes = [8, 1], strides = [1, 1]} : vector<8x128xf32> to vector<8x1xf32>
    %8 = arith.subf %6, %7 : vector<8x1xf32>
    %9 = math.exp %8 : vector<8x1xf32>
    %cst_5 = arith.constant 1.000000e+00 : f32
    %10 = vector.broadcast %cst_5 : f32 to vector<8x1xf32>
    %11 = arith.addf %10, %9 : vector<8x1xf32>
    %cst_6 = arith.constant 1.000000e+00 : f32
    %12 = vector.broadcast %cst_6 : f32 to vector<8x1xf32>
    %13 = arith.divf %12, %11 : vector<8x1xf32>
    %cst_7 = arith.constant 1.000000e+00 : f32
    %14 = vector.broadcast %cst_7 : f32 to vector<8x1xf32>
    %15 = arith.subf %14, %13 : vector<8x1xf32>
    %16 = vector.extract_strided_slice %5 {offsets = [0, 2], sizes = [8, 1], strides = [1, 1]} : vector<8x128xf32> to vector<8x1xf32>
    %17 = arith.mulf %13, %16 : vector<8x1xf32>
    %18 = vector.extract_strided_slice %5 {offsets = [0, 3], sizes = [8, 1], strides = [1, 1]} : vector<8x128xf32> to vector<8x1xf32>
    %19 = arith.mulf %15, %18 : vector<8x1xf32>
    %20 = arith.addf %17, %19 : vector<8x1xf32>
    %c0_8 = arith.constant 0 : index
    %c0_9 = arith.constant 0 : index
    %21 = vector.load %arg4[%c0_8, %c0_9] : memref<8x1xf32, #tpu.memory_space<vmem>>, vector<8x1xf32>
    tpu.vector_store %arg4[%c0_8, %c0_9], %20 {strides = array<i32>} : memref<8x1xf32, #tpu.memory_space<vmem>>, vector<8x1xf32>,
    return
  }
  func.func @transform_0(%arg0: i32) -> (i32, i32) {
    %c0_i32 = arith.constant 0 : i32
    %c0_i32_0 = arith.constant 0 : i32
    return %arg0, %c0_i32 : i32, i32
  }
  func.func @transform_1(%arg0: i32) -> (i32, i32) {
    %c0_i32 = arith.constant 0 : i32
    %c0_i32_0 = arith.constant 0 : i32
    %c0_i32_1 = arith.constant 0 : i32
    return %c0_i32, %c0_i32_0 : i32, i32
  }
  func.func @transform_2(%arg0: i32) -> (i32, i32) {
    %c0_i32 = arith.constant 0 : i32
    %c0_i32_0 = arith.constant 0 : i32
    %c0_i32_1 = arith.constant 0 : i32
    return %c0_i32, %c0_i32_0 : i32, i32
  }
  func.func @transform_3(%arg0: i32) -> (i32, i32) {
    %c0_i32 = arith.constant 0 : i32
    %c0_i32_0 = arith.constant 0 : i32
    return %arg0, %c0_i32 : i32, i32
  }
}

</mosaic_0001>

<llo_original>
// kernel: tpu_custom_call.1
$region0: #{tpu_custom_call.1}
  #allocation0 [shape = 'u32[]', space=smem, size = 0x4, offset = 0x4, fixed_abs, tag = 'smem constant byte address 0x4 - core index']
  #allocation1 [shape = 'u32[72,128]{1,0:T(1,128)}', space=vmem, size = 0x9000, scoped, tag = 'internal scratch']
  %s0 = inlined_call_operand.hbm [shape: f32[8,64], index: 0, kind: input, shape index: {}]
  %s1 = inlined_call_operand.hbm [shape: f32[64,128], index: 1, kind: input, shape index: {}]
  %s2 = inlined_call_operand.vmem [shape: f32[1,128], index: 2, kind: input, shape index: {}]
  %s3 = inlined_call_operand.vmem [shape: f32[8,1], index: 3, kind: output, shape index: {}]
  %s4 = sld [smem:[#allocation0]]
  $region30: #{tpu_custom_call.1} parent=0
    _
  %s6 = ssub.s32 1, %s4
  %s7 = scalar_select 0, %s6, %s4
  $region1: #{tpu_custom_call.1} parent=0
    #allocation2 [shape = 'u8[4096]{0}', space=vmem, size = 0x1000, scoped, tag = 'input window, operand 0, single buffered']
    #allocation3 [shape = 's32[1]{0}', space=sflag, size = 0x4, scoped, tag = 'scoped memory for tpu_custom_call.1']
    #allocation4 [shape = 'u8[32768]{0}', space=vmem, size = 0x8000, scoped, tag = 'input window, operand 1, single buffered']
    #allocation5 [shape = 's32[1]{0}', space=sflag, size = 0x4, scoped, tag = 'scoped memory for tpu_custom_call.1']
    %8 = vsyncpa [#allocation3], 0
    %9 = vsyncpa [#allocation5], 0
    // Predicated region
    $region2: #{tpu_custom_call.1} parent=1 // pred_check
      _
    $region3: #{tpu_custom_call.1} parent=1 // pred_check_branch
      %11 = sbr.rel (0) target = $region5
    $region4: #{tpu_custom_call.1} parent=1 // pred_region
      %13 = vsyncadd [#allocation3], 0
      %s15 = sshll.u32 %s0, 4
      %s16 = int_to_ptr.hbm [resolvable:$true] %s15
      %s17 = sshll.u32 [#allocation2], 4
      %s18 = int_to_ptr.vmem [resolvable:$true] %s17
      %20 = dma.hbm_to_vmem [thread:$0]  %s16, 128, %s18, [#allocation3]
    $region5: #{tpu_custom_call.1} parent=1 // pred_fallthru
      _
    // Predicated region
    $region6: #{tpu_custom_call.1} parent=1 // pred_check
      _
    $region7: #{tpu_custom_call.1} parent=1 // pred_check_branch
      %22 = sbr.rel (0) target = $region9
    $region8: #{tpu_custom_call.1} parent=1 // pred_region
      %24 = vsyncadd [#allocation5], 0
      %s25 = sshll.u32 %s1, 4
      %s26 = int_to_ptr.hbm [resolvable:$true] %s25
      %s27 = sshll.u32 [#allocation4], 4
      %s28 = int_to_ptr.vmem [resolvable:$true] %s27
      %33 = dma.hbm_to_vmem [thread:$0]  %s26, 1024, %s28, [#allocation5], 128, 128, 8
    $region9: #{tpu_custom_call.1} parent=1 // pred_fallthru
      _
    // Predicated region
    $region10: #{tpu_custom_call.1} parent=1 // pred_check
      _
    $region11: #{tpu_custom_call.1} parent=1 // pred_check_branch
      %35 = sbr.rel (0) target = $region13
    $region12: #{tpu_custom_call.1} parent=1 // pred_region
      _
    $region13: #{tpu_custom_call.1} parent=1 // pred_fallthru
      _
    // Predicated region
    $region14: #{tpu_custom_call.1} parent=1 // pred_check
      _
    $region15: #{tpu_custom_call.1} parent=1 // pred_check_branch
      %37 = sbr.rel (0) target = $region17
    $region16: #{tpu_custom_call.1} parent=1 // pred_region
      %39 = dma.done [#allocation3], 128
    $region17: #{tpu_custom_call.1} parent=1 // pred_fallthru
      _
    // Predicated region
    $region18: #{tpu_custom_call.1} parent=1 // pred_check
      _
    $region19: #{tpu_custom_call.1} parent=1 // pred_check_branch
      %41 = sbr.rel (0) target = $region21
    $region20: #{tpu_custom_call.1} parent=1 // pred_region
      %43 = dma.done [#allocation5], 1024
    $region21: #{tpu_custom_call.1} parent=1 // pred_fallthru
      _
    %v44 = vld [vmem:[#allocation2] sm:$0xff]
    %v45 = vld [vmem:[#allocation4] sm:$0xff]
    %v46 = vld [vmem:[#allocation4 + $0x8] sm:$0xff]
    %v47 = vld [vmem:[#allocation4 + $0x10] sm:$0xff]
    %v48 = vld [vmem:[#allocation4 + $0x18] sm:$0xff]
    %v49 = vld [vmem:[#allocation4 + $0x20] sm:$0xff]
    %v50 = vld [vmem:[#allocation4 + $0x28] sm:$0xff]
    %v51 = vld [vmem:[#allocation4 + $0x30] sm:$0xff]
    %v52 = vld [vmem:[#allocation4 + $0x38] sm:$0xff]
    %v53 = vld [vmem:[%s2] sm:$0x1]
    %v55 = vperm.slane %v53, 0
    %vm57 = vcmask 523264
    %v59 = vsel %vm57, %v44, 0
    %61 = vmatpush.msra.mxu0 0.0
    %62 = vmatpush.msra.mxu0 0.0
    %63 = vmatpush.msra.mxu0 0.0
    %64 = vmatpush.msra.mxu0 0.0
    %65 = vmatpush.msra.mxu0 0.0
    %66 = vmatpush.msra.mxu0 0.0
    %67 = vmatpush.msra.mxu0 0.0
    %68 = vmatpush.msra.mxu0 0.0
    %69 = vmatpush.msra.mxu0 %v52
    %70 = vmatpush.msra.mxu0 %v51
    %71 = vmatpush.msra.mxu0 %v50
    %72 = vmatpush.msra.mxu0 %v49
    %73 = vmatpush.msra.mxu0 %v48
    %74 = vmatpush.msra.mxu0 %v47
    %75 = vmatpush.msra.mxu0 %v46
    %76 = vmatpush.msra.mxu0 %v45
    %77 = vmatmul.f32.gmra.mxu0 %v59
    %v78 = vpop.f32.mrf.mxu0
    %v79 = vadd.f32 %v55, %v78
    %80 = vdwg.mxu0
    %82 = vrot.lane.b32.xlu0 %v79, 1
    %v83 = vpop.permute.xlu0 %82
    %v85 = vsub.f32 %v79, %v83
    %v86 = vmul.f32 %v85, 1.442695
    %v87 = vpow.pop %v86
    %v88 = vadd.f32 %v87, 1.0
    %v89 = vrcp.pop %v88
    %v90 = vmul.f32 %v88, %v89
    %v91 = vsub.f32 1.0, %v90
    %v92 = vmul.f32 %v89, %v91
    %v93 = vadd.f32 %v89, %v92
    %vm94 = vweird.f32 %v88
    %vm95 = vweird.f32 %v89
    %vm96 = vmor %vm94, %vm95
    %v97 = vsel %vm96, %v89, %v93
    %v98 = vand.u32 2147483647, %v88
    %vm99 = vcmp.eq.f32.partialorder %v98, 8.507059e+37
    %v100 = vand.u32 %v88, 2147483648
    %v101 = vor.u32 1.1754944e-38, %v100
    %v102 = vsel %vm99, %v101, %v97
    %v103 = vmul.f32 1.0, %v102
    %v104 = vsub.f32 1.0, %v103
    %105 = vrot.lane.b32.xlu0 %v79, 127
    %v106 = vpop.permute.xlu0 %105
    %v108 = vmul.f32 %v103, %v106
    %109 = vrot.lane.b32.xlu0 %v79, 126
    %v110 = vpop.permute.xlu0 %109
    %v112 = vmul.f32 %v104, %v110
    %v113 = vadd.f32 %v108, %v112
    %115 = vrot.lane.b32.xlu0 %v113, 127
    %v116 = vpop.permute.xlu0 %115
    %vm118 = vcmask 7168
    %119 = vst.msk [vmem:[%s3] sm:$0xff] %vm118, %v116
    // Predicated region
    $region22: #{tpu_custom_call.1} parent=1 // pred_check
      _
    $region23: #{tpu_custom_call.1} parent=1 // pred_check_branch
      %121 = sbr.rel (0) target = $region25
    $region24: #{tpu_custom_call.1} parent=1 // pred_region
      _
    $region25: #{tpu_custom_call.1} parent=1 // pred_fallthru
      _
    // Predicated region
    $region26: #{tpu_custom_call.1} parent=1 // pred_check
      _
    $region27: #{tpu_custom_call.1} parent=1 // pred_check_branch
      %123 = sbr.rel (0) target = $region29
    $region28: #{tpu_custom_call.1} parent=1 // pred_region
      _
    $region29: #{tpu_custom_call.1} parent=1 // pred_fallthru
      _
    %124 = vsyncpa [#allocation3], 1
    %125 = vsyncpa [#allocation5], 1

</llo_original>
